<compile_context>
chip_gen: v7x
topology: tpu7x:2x2x1
jax: 0.10.0
libtpu: 0.0.40
codegen_flags: <defaults>
</compile_context>

<pallas_src>
import jax
import jax.numpy as jnp
from jax.experimental import pallas as pl
from jax.experimental.pallas import tpu as pltpu

PATCH = 4            # patch size of the synthetic vision tower
HIDDEN = 128         # hidden width (lane-dense)
PROJ = 128           # sentence-embedding dim (lane-dense output)
VOCAB = 128          # synthetic vocabulary (lane-dense one-hot)

_VMEM_LIMIT_BYTES = 32 * 1024 * 1024   # safe on v5e/v6e (128 MiB) and v7x (64 MiB)
_TILE_VMEM_BUDGET = 8 * 1024 * 1024    # budget for the double-buffered streamed block


def _round_up(x, m):
    return (x + m - 1) // m * m


def _tile_rows(n_rows, bytes_per_row, max_rows=256):
    """Samples per grid step: >=8 (sublane aligned), VMEM-budget aware
    (2x double-buffered streamed block), and capped so the 'parallel' grid has
    >=2 steps when the problem is large enough for both v7x TensorCores."""
    by_vmem = max(8, (_TILE_VMEM_BUDGET // max(1, 2 * bytes_per_row)) // 8 * 8)
    n_pad8 = _round_up(n_rows, 8)
    tile = min(by_vmem, max_rows, n_pad8)
    if n_pad8 >= 16:
        tile = min(tile, _round_up(n_pad8 // 2, 8))
    return max(8, tile)


# --------------------------------------------------------------------------
# Kernels
# --------------------------------------------------------------------------
def _make_image_kernel(imgs_per_tile, np_pad, np_real):
    inv_np = 1.0 / float(np_real)

    def kernel(patches_ref, wp_ref, bp_ref, wv_ref, bv_ref, out_ref):
        # patches_ref: (imgs_per_tile * np_pad, cpp_pad) bf16
        h = jnp.dot(patches_ref[...], wp_ref[...],
                    preferred_element_type=jnp.float32) + bp_ref[...]
        # bf16 GELU: halves EUP work on v6e/v7x.
        # TODO(synk): on v5e (no bf16 VPU/EUP) keep this in f32.
        h = jax.nn.gelu(h.astype(jnp.bfloat16))
        h3 = h.reshape(imgs_per_tile, np_pad, HIDDEN)
        if np_pad != np_real:
            # Zero padded patch rows (they would carry gelu(bias)).
            pidx = jax.lax.broadcasted_iota(
                jnp.int32, (imgs_per_tile, np_pad, HIDDEN), 1)
            h3 = jnp.where(pidx < np_real, h3, jnp.zeros_like(h3))
        # XLU sublane mean-pool over the patch axis (no MXU pool matmul/DMA).
        pooled = jnp.sum(h3.astype(jnp.float32), axis=1) * inv_np
        emb = jnp.dot(pooled.astype(jnp.bfloat16), wv_ref[...],
                      preferred_element_type=jnp.float32) + bv_ref[...]
        out_ref[...] = emb                     # (imgs_per_tile, PROJ) f32

    return kernel


def _make_text_kernel(txt_per_tile, seq_len):
    def kernel(ids_ref, scale_ref, tok_ref, wt_ref, bt_ref, out_ref):
        ids = ids_ref[...]                     # (T, L) int32
        scale = scale_ref[...]                 # (T, L) f32  (mask / token count)
        # Fused gather + masked-mean pool:
        #   counts[t, v] = sum_l scale[t, l] * [ids[t, l] == v]
        #   pooled      = counts @ tok_embed
        vocab_iota = jax.lax.broadcasted_iota(
            jnp.int32, (txt_per_tile, seq_len, VOCAB), 2)
        ids_b = jnp.broadcast_to(ids[:, :, None], (txt_per_tile, seq_len, VOCAB))
        scl_b = jnp.broadcast_to(scale[:, :, None], (txt_per_tile, seq_len, VOCAB))
        sel = jnp.where(ids_b == vocab_iota, scl_b, 0.0)       # (T, L, V) f32
        counts = jnp.sum(sel, axis=1)                          # (T, V) f32
        pooled = jnp.dot(counts.astype(jnp.bfloat16), tok_ref[...],
                         preferred_element_type=jnp.float32)   # (T, HIDDEN)
        emb = jnp.dot(pooled.astype(jnp.bfloat16), wt_ref[...],
                      preferred_element_type=jnp.float32) + bt_ref[...]
        out_ref[...] = emb                     # (txt_per_tile, PROJ) f32

    return kernel


# --------------------------------------------------------------------------
# pallas_call wrappers (synthetic 'sentence_embedding' encoders)
# --------------------------------------------------------------------------
@jax.jit
def encode_images(params, reshaped_pixel_values):
    """(N_img, C, H, W) NCHW float -> (N_img, PROJ) f32 sentence embeddings."""
    n_img, num_channels, height, width = reshaped_pixel_values.shape
    hp, wp_ = height // PATCH, width // PATCH
    np_real = hp * wp_
    np_pad = _round_up(np_real, 8)
    cpp = num_channels * PATCH * PATCH
    cpp_pad = _round_up(cpp, 128)
    assert params["wp"].shape[0] == cpp_pad, "params built for a different patch size"

    # bf16 BEFORE the NCHW -> patch-major transpose (halves the HBM copy).
    x = reshaped_pixel_values.astype(jnp.bfloat16)
    patches = x.reshape(n_img, num_channels, hp, PATCH, wp_, PATCH)
    patches = patches.transpose(0, 2, 4, 1, 3, 5).reshape(n_img, np_real, cpp)
    patches = jnp.pad(
        patches, ((0, 0), (0, np_pad - np_real), (0, cpp_pad - cpp)))

    imgs_per_tile = _tile_rows(n_img, np_pad * cpp_pad * 2)
    n_img_pad = _round_up(n_img, imgs_per_tile)
    if n_img_pad != n_img:
        patches = jnp.pad(patches, ((0, n_img_pad - n_img), (0, 0), (0, 0)))
    tile_m = imgs_per_tile * np_pad
    flat = patches.reshape(n_img_pad * np_pad, cpp_pad)

    out = pl.pallas_call(
        _make_image_kernel(imgs_per_tile, np_pad, np_real),
        out_shape=jax.ShapeDtypeStruct((n_img_pad, PROJ), jnp.float32),
        grid=(n_img_pad // imgs_per_tile,),
        in_specs=[
            pl.BlockSpec((tile_m, cpp_pad), lambda i: (i, 0)),
            pl.BlockSpec((cpp_pad, HIDDEN), lambda i: (0, 0)),   # VMEM-resident
            pl.BlockSpec((1, HIDDEN), lambda i: (0, 0)),
            pl.BlockSpec((HIDDEN, PROJ), lambda i: (0, 0)),
            pl.BlockSpec((1, PROJ), lambda i: (0, 0)),
        ],
        out_specs=pl.BlockSpec((imgs_per_tile, PROJ), lambda i: (i, 0)),
        compiler_params=pltpu.CompilerParams(
            dimension_semantics=("parallel",),
            vmem_limit_bytes=_VMEM_LIMIT_BYTES),
    )(flat, params["wp"], params["bp"], params["wv"], params["bv"])
    return out[:n_img]


@jax.jit
def encode_texts(params, reshaped_input_ids, reshaped_attention_mask):
    """(N_txt, L) ids + mask -> (N_txt, PROJ) f32 sentence embeddings."""
    n_txt, seq_len = reshaped_input_ids.shape
    mask = reshaped_attention_mask.astype(jnp.float32)
    cnt = jnp.maximum(mask.sum(-1, keepdims=True), 1.0)
    scale = mask / cnt                                   # masked-mean weights (N, L)

    # Only ids (4 B) + scale (4 B) per token are streamed; the embedding table,
    # projection and bias live in VMEM via constant index_maps.
    txt_per_tile = _tile_rows(n_txt, seq_len * 8)
    n_txt_pad = _round_up(n_txt, txt_per_tile)
    ids = reshaped_input_ids.astype(jnp.int32)
    if n_txt_pad != n_txt:
        ids = jnp.pad(ids, ((0, n_txt_pad - n_txt), (0, 0)))
        scale = jnp.pad(scale, ((0, n_txt_pad - n_txt), (0, 0)))

    out = pl.pallas_call(
        _make_text_kernel(txt_per_tile, seq_len),
        out_shape=jax.ShapeDtypeStruct((n_txt_pad, PROJ), jnp.float32),
        grid=(n_txt_pad // txt_per_tile,),
        in_specs=[
            pl.BlockSpec((txt_per_tile, seq_len), lambda i: (i, 0)),
            pl.BlockSpec((txt_per_tile, seq_len), lambda i: (i, 0)),
            pl.BlockSpec((VOCAB, HIDDEN), lambda i: (0, 0)),     # VMEM-resident
            pl.BlockSpec((HIDDEN, PROJ), lambda i: (0, 0)),
            pl.BlockSpec((1, PROJ), lambda i: (0, 0)),
        ],
        out_specs=pl.BlockSpec((txt_per_tile, PROJ), lambda i: (i, 0)),
        compiler_params=pltpu.CompilerParams(
            dimension_semantics=("parallel",),
            vmem_limit_bytes=_VMEM_LIMIT_BYTES),
    )(ids, scale, params["tok_embed"], params["wt"], params["bt"])
    return out[:n_txt]


# --------------------------------------------------------------------------
# Parameters (deterministic synthetic encoder weights, bf16 for the MXU)
# --------------------------------------------------------------------------
def init_params(key, num_channels=3):
    ks = jax.random.split(key, 4)
    cpp_pad = _round_up(num_channels * PATCH * PATCH, 128)
    scale = 0.02
    return dict(
        wp=(jax.random.normal(ks[0], (cpp_pad, HIDDEN), jnp.float32) * scale
            ).astype(jnp.bfloat16),
        bp=jnp.zeros((1, HIDDEN), jnp.float32),
        wv=(jax.random.normal(ks[1], (HIDDEN, PROJ), jnp.float32) * scale
            ).astype(jnp.bfloat16),
        bv=jnp.zeros((1, PROJ), jnp.float32),
        tok_embed=(jax.random.normal(ks[2], (VOCAB, HIDDEN), jnp.float32) * scale
                   ).astype(jnp.bfloat16),
        wt=(jax.random.normal(ks[3], (HIDDEN, PROJ), jnp.float32) * scale
            ).astype(jnp.bfloat16),
        bt=jnp.zeros((1, PROJ), jnp.float32),
    )


# --------------------------------------------------------------------------
# Forward pass mirroring ImageLevelSeparateImageAndTextEncoder.forward
# --------------------------------------------------------------------------
def image_level_separate_image_and_text_encoder_forward(
        params, pixel_values, input_ids, attention_mask,
        use_image=True, use_text=True):
    batch_size, textual_sequence_num, sequence_len = input_ids.shape

    if use_image and use_text:
        batch_size, sequence_num, num_channels, height, width = pixel_values.shape
        reshaped_input_ids = input_ids.reshape(batch_size * textual_sequence_num, -1)
        reshaped_attention_mask = attention_mask.reshape(batch_size * textual_sequence_num, -1)
        reshaped_pixel_values = pixel_values.reshape(batch_size * sequence_num,
                                                     num_channels, height, width)
        # encode_input: separate text_model / image encoder -> sentence embeddings
        text_embeds = encode_texts(params, reshaped_input_ids, reshaped_attention_mask)
        image_embeds = encode_images(params, reshaped_pixel_values)

        original_shape_img = image_embeds.reshape(batch_size, sequence_num, -1)
        mention_image_embed = original_shape_img[:, 0:1, :]
        entity_image_embeds = original_shape_img[:, 1:, :]
        original_shape_txt = text_embeds.reshape(batch_size, textual_sequence_num, -1)
        mention_text_embed = original_shape_txt[:, 0:1, :]
        entity_text_embeds = original_shape_txt[:, 1:, :]
    elif use_text:
        reshaped_input_ids = input_ids.reshape(batch_size * textual_sequence_num, -1)
        reshaped_attention_mask = attention_mask.reshape(batch_size * textual_sequence_num, -1)
        text_embeds = encode_texts(params, reshaped_input_ids, reshaped_attention_mask)
        original_shape_txt = text_embeds.reshape(batch_size, textual_sequence_num, -1)
        mention_text_embed = original_shape_txt[:, 0:1, :]
        entity_text_embeds = original_shape_txt[:, 1:, :]
        mention_image_embed, entity_image_embeds = mention_text_embed, entity_text_embeds
    else:  # image only
        batch_size, sequence_num, num_channels, height, width = pixel_values.shape
        reshaped_pixel_values = pixel_values.reshape(batch_size * sequence_num,
                                                     num_channels, height, width)
        image_embeds = encode_images(params, reshaped_pixel_values)
        original_shape_img = image_embeds.reshape(batch_size, sequence_num, -1)
        mention_image_embed = original_shape_img[:, 0:1, :]
        entity_image_embeds = original_shape_img[:, 1:, :]
        mention_text_embed, entity_text_embeds = mention_image_embed, entity_image_embeds

    # split_attention (use_attributes=False path of the module)
    mention_text_attention_mask = attention_mask[:, 0:1, :]
    entity_text_attention_mask = attention_mask[:, 1:, :]

    return (mention_text_embed, entity_text_embeds, mention_image_embed,
            entity_image_embeds, mention_text_attention_mask,
            entity_text_attention_mask, batch_size)


if __name__ == "__main__":
    key = jax.random.PRNGKey(0)
    k_px, k_ids, k_params = jax.random.split(key, 3)

    B = 2                      # batch
    S = 3                      # sequence_num: 1 mention image + 2 entity images
    T = 4                      # textual_sequence_num: 1 mention text + 3 entity texts
    C, H, W = 4, 16, 16        # NCHW image
    L = 8                      # sequence_len

    pixel_values = jax.random.normal(k_px, (B, S, C, H, W), jnp.float32)
    input_ids = jax.random.randint(k_ids, (B, T, L), 0, VOCAB, dtype=jnp.int32)
    # simple padding mask: first 6 tokens real, last 2 padding
    attention_mask = jnp.broadcast_to(
        (jnp.arange(L) < 6).astype(jnp.int32), (B, T, L))

    params = init_params(k_params, num_channels=C)

    outs = image_level_separate_image_and_text_encoder_forward(
        params, pixel_values, input_ids, attention_mask)
    (mention_text_embed, entity_text_embeds, mention_image_embed,
     entity_image_embeds, mention_text_attn, entity_text_attn, bsz) = outs

    jax.block_until_ready(outs[:6])

    assert mention_text_embed.shape == (B, 1, PROJ)
    assert entity_text_embeds.shape == (B, T - 1, PROJ)
    assert mention_image_embed.shape == (B, 1, PROJ)
    assert entity_image_embeds.shape == (B, S - 1, PROJ)
    assert mention_text_attn.shape == (B, 1, L)
    assert entity_text_attn.shape == (B, T - 1, L)
    assert bsz == B

    # ---- pure-JAX references for the synthetic towers (loose bf16 tolerance) ----
    ids_flat = input_ids.reshape(B * T, L)
    mask_flat = attention_mask.reshape(B * T, L).astype(jnp.float32)
    tok = params["tok_embed"].astype(jnp.float32)[ids_flat]
    cnt = jnp.maximum(mask_flat.sum(-1, keepdims=True), 1.0)
    pooled_t = jnp.einsum("nl,nlh->nh", mask_flat / cnt, tok)
    ref_text = pooled_t @ params["wt"].astype(jnp.float32) + params["bt"]

    px_flat = pixel_values.reshape(B * S, C, H, W).astype(jnp.bfloat16)
    hp_, wp2 = H // PATCH, W // PATCH
    pr = px_flat.reshape(B * S, C, hp_, PATCH, wp2, PATCH)
    pr = pr.transpose(0, 2, 4, 1, 3, 5).reshape(B * S, hp_ * wp2, C * PATCH * PATCH)
    pr = pr.astype(jnp.float32)
    wpw = params["wp"].astype(jnp.float32)[: C * PATCH * PATCH]
    h_ref = jax.nn.gelu((pr @ wpw + params["bp"]).astype(jnp.bfloat16)).astype(jnp.float32)
    ref_img = h_ref.mean(axis=1) @ params["wv"].astype(jnp.float32) + params["bv"]

    got_text = jnp.concatenate([mention_text_embed, entity_text_embeds],
                               axis=1).reshape(B * T, PROJ)
    got_img = jnp.concatenate([mention_image_embed, entity_image_embeds],
                              axis=1).reshape(B * S, PROJ)
    assert float(jnp.max(jnp.abs(got_text - ref_text))) < 5e-3
    assert float(jnp.max(jnp.abs(got_img - ref_img))) < 5e-3

    print("KERNEL_OK")
</pallas_src>

<mosaic_0001>
module attributes {stable_mosaic.version = 11 : i64} {
  func.func @kernel(%arg0: i32, %arg1: memref<8x8xi32, #tpu.memory_space<vmem>>, %arg2: memref<8x8xf32, #tpu.memory_space<vmem>>, %arg3: memref<128x128xbf16, #tpu.memory_space<vmem>>, %arg4: memref<128x128xbf16, #tpu.memory_space<vmem>>, %arg5: memref<1x128xf32, #tpu.memory_space<vmem>>, %arg6: memref<8x128xf32, #tpu.memory_space<vmem>>) attributes {dimension_semantics = [#tpu.dimension_semantics<parallel>], iteration_bounds = array<i64: 1>, scalar_prefetch = 0 : i64, scratch_operands = 0 : i64, tpu.core_type = #tpu.core_type<tc>, window_params = [{transform_indices = @transform_0, window_bounds = array<i64: 8, 8>}, {transform_indices = @transform_1, window_bounds = array<i64: 8, 8>}, {pipeline_mode = #tpu.pipeline_mode<synchronous>, transform_indices = @transform_2, window_bounds = array<i64: 128, 128>}, {pipeline_mode = #tpu.pipeline_mode<synchronous>, transform_indices = @transform_3, window_bounds = array<i64: 128, 128>}, {pipeline_mode = #tpu.pipeline_mode<synchronous>, transform_indices = @transform_4, window_bounds = array<i64: 1, 128>}, {transform_indices = @transform_5, window_bounds = array<i64: 8, 128>}]} {
    %c0 = arith.constant 0 : index
    %c0_0 = arith.constant 0 : index
    %0 = vector.load %arg1[%c0, %c0_0] : memref<8x8xi32, #tpu.memory_space<vmem>>, vector<8x8xi32>
    %c0_1 = arith.constant 0 : index
    %c0_2 = arith.constant 0 : index
    %1 = vector.load %arg2[%c0_1, %c0_2] : memref<8x8xf32, #tpu.memory_space<vmem>>, vector<8x8xf32>
    %2 = tpu.iota {dimensions = array<i32: 2>} : vector<8x8x128xi32>
    %3 = vector.shape_cast %0 : vector<8x8xi32> to vector<8x8x1xi32>
    %4 = vector.shape_cast %3 : vector<8x8x1xi32> to vector<8x8x1xi32>
    %5 = vector.broadcast %4 : vector<8x8x1xi32> to vector<8x8x128xi32>
    %6 = vector.shape_cast %1 : vector<8x8xf32> to vector<8x8x1xf32>
    %7 = vector.shape_cast %6 : vector<8x8x1xf32> to vector<8x8x1xf32>
    %8 = vector.broadcast %7 : vector<8x8x1xf32> to vector<8x8x128xf32>
    %9 = arith.cmpi eq, %5, %2 : vector<8x8x128xi32>
    %cst = arith.constant 0.000000e+00 : f32
    %10 = vector.broadcast %cst : f32 to vector<8x8x128xf32>
    %11 = arith.select %9, %8, %10 : vector<8x8x128xi1>, vector<8x8x128xf32>
    %cst_3 = arith.constant dense<0.000000e+00> : vector<8x128xf32>
    %12 = vector.multi_reduction <add>, %11, %cst_3 [1] : vector<8x8x128xf32> to vector<8x128xf32>
    %13 = arith.truncf %12 : vector<8x128xf32> to vector<8x128xbf16>
    %c0_4 = arith.constant 0 : index
    %c0_5 = arith.constant 0 : index
    %14 = vector.load %arg3[%c0_4, %c0_5] : memref<128x128xbf16, #tpu.memory_space<vmem>>, vector<128x128xbf16>
    %cst_6 = arith.constant dense<0.000000e+00> : vector<8x128xf32>
    %15 = tpu.matmul %13, %14, %cst_6 {dimension_numbers = #tpu.dot_dimension_numbers<[1], [0], [0], [1], [0, 0, 1, 1], [], []>} : vector<8x128xbf16>, vector<128x128xbf16>, vector<8x128xf32> -> vector<8x128xf32>
    %16 = arith.truncf %15 : vector<8x128xf32> to vector<8x128xbf16>
    %c0_7 = arith.constant 0 : index
    %c0_8 = arith.constant 0 : index
    %17 = vector.load %arg4[%c0_7, %c0_8] : memref<128x128xbf16, #tpu.memory_space<vmem>>, vector<128x128xbf16>
    %cst_9 = arith.constant dense<0.000000e+00> : vector<8x128xf32>
    %18 = tpu.matmul %16, %17, %cst_9 {dimension_numbers = #tpu.dot_dimension_numbers<[1], [0], [0], [1], [0, 0, 1, 1], [], []>} : vector<8x128xbf16>, vector<128x128xbf16>, vector<8x128xf32> -> vector<8x128xf32>
    %c0_10 = arith.constant 0 : index
    %c0_11 = arith.constant 0 : index
    %19 = vector.load %arg5[%c0_10, %c0_11] : memref<1x128xf32, #tpu.memory_space<vmem>>, vector<1x128xf32>
    %20 = vector.broadcast %19 : vector<1x128xf32> to vector<8x128xf32>
    %21 = arith.addf %18, %20 : vector<8x128xf32>
    %c0_12 = arith.constant 0 : index
    %c0_13 = arith.constant 0 : index
    %22 = vector.load %arg6[%c0_12, %c0_13] : memref<8x128xf32, #tpu.memory_space<vmem>>, vector<8x128xf32>
    tpu.vector_store %arg6[%c0_12, %c0_13], %21 {strides = array<i32>} : memref<8x128xf32, #tpu.memory_space<vmem>>, vector<8x128xf32>,
    return
  }
  func.func @transform_0(%arg0: i32) -> (i32, i32) {
    %c0_i32 = arith.constant 0 : i32
    %c0_i32_0 = arith.constant 0 : i32
    return %arg0, %c0_i32 : i32, i32
  }
  func.func @transform_1(%arg0: i32) -> (i32, i32) {
    %c0_i32 = arith.constant 0 : i32
    %c0_i32_0 = arith.constant 0 : i32
    return %arg0, %c0_i32 : i32, i32
  }
  func.func @transform_2(%arg0: i32) -> (i32, i32) {
    %c0_i32 = arith.constant 0 : i32
    %c0_i32_0 = arith.constant 0 : i32
    %c0_i32_1 = arith.constant 0 : i32
    return %c0_i32, %c0_i32_0 : i32, i32
  }
  func.func @transform_3(%arg0: i32) -> (i32, i32) {
    %c0_i32 = arith.constant 0 : i32
    %c0_i32_0 = arith.constant 0 : i32
    %c0_i32_1 = arith.constant 0 : i32
    return %c0_i32, %c0_i32_0 : i32, i32
  }
  func.func @transform_4(%arg0: i32) -> (i32, i32) {
    %c0_i32 = arith.constant 0 : i32
    %c0_i32_0 = arith.constant 0 : i32
    %c0_i32_1 = arith.constant 0 : i32
    return %c0_i32, %c0_i32_0 : i32, i32
  }
  func.func @transform_5(%arg0: i32) -> (i32, i32) {
    %c0_i32 = arith.constant 0 : i32
    %c0_i32_0 = arith.constant 0 : i32
    return %arg0, %c0_i32 : i32, i32
  }
}

</mosaic_0001>

<llo_original>
// kernel: encode_texts.1
$region0: #{encode_texts.1}
  #allocation0 [shape = 'u32[]', space=smem, size = 0x4, offset = 0x4, fixed_abs, tag = 'smem constant byte address 0x4 - core index']
  #allocation1 [shape = 'u32[144,128]{1,0:T(1,128)}', space=vmem, size = 0x12000, scoped, tag = 'internal scratch']
  %s0 = inlined_call_operand.vmem [shape: s32[8,8], index: 0, kind: input, shape index: {}]
  %s1 = inlined_call_operand.vmem [shape: f32[8,8], index: 1, kind: input, shape index: {}]
  %s2 = inlined_call_operand.hbm [shape: bf16[128,128], index: 2, kind: input, shape index: {}]
  %s3 = inlined_call_operand.hbm [shape: bf16[128,128], index: 3, kind: input, shape index: {}]
  %s4 = inlined_call_operand.vmem [shape: f32[1,128], index: 4, kind: input, shape index: {}]
  %s5 = inlined_call_operand.hbm [shape: f32[8,128], index: 5, kind: output, shape index: {}]
  %s6 = sld [smem:[#allocation0]]
  $region38: #{encode_texts.1} parent=0
    _
  %s8 = ssub.s32 1, %s6
  %s9 = scalar_select 0, %s8, %s6
  $region1: #{encode_texts.1} parent=0
    #allocation2 [shape = 'u8[32768]{0}', space=vmem, size = 0x8000, scoped, tag = 'input window, operand 2, single buffered']
    #allocation3 [shape = 's32[1]{0}', space=sflag, size = 0x4, scoped, tag = 'scoped memory for encode_texts.1']
    #allocation4 [shape = 's32[1]{0}', space=sflag, size = 0x4, scoped, tag = 'scoped memory for encode_texts.1']
    #allocation5 [shape = 'u8[32768]{0}', space=vmem, size = 0x8000, scoped, tag = 'input window, operand 3, single buffered']
    #allocation6 [shape = 's32[1]{0}', space=sflag, size = 0x4, scoped, tag = 'scoped memory for encode_texts.1']
    #allocation7 [shape = 'u8[4096]{0}', space=vmem, size = 0x1000, scoped, tag = 'output window, operand 0, single buffered']
    %10 = vsyncpa [#allocation3], 0
    %11 = vsyncpa [#allocation6], 0
    %12 = vsyncpa [#allocation4], 0
    // Predicated region
    $region2: #{encode_texts.1} parent=1 // pred_check
      _
    $region3: #{encode_texts.1} parent=1 // pred_check_branch
      %14 = sbr.rel (0) target = $region5
    $region4: #{encode_texts.1} parent=1 // pred_region
      _
    $region5: #{encode_texts.1} parent=1 // pred_fallthru
      _
    // Predicated region
    $region6: #{encode_texts.1} parent=1 // pred_check
      _
    $region7: #{encode_texts.1} parent=1 // pred_check_branch
      %16 = sbr.rel (0) target = $region9
    $region8: #{encode_texts.1} parent=1 // pred_region
      _
    $region9: #{encode_texts.1} parent=1 // pred_fallthru
      _
    // Predicated region
    $region10: #{encode_texts.1} parent=1 // pred_check
      _
    $region11: #{encode_texts.1} parent=1 // pred_check_branch
      %18 = sbr.rel (0) target = $region13
    $region12: #{encode_texts.1} parent=1 // pred_region
      %s20 = ssub.s32 1024, 1024
      %21 = vsyncadd [#allocation3], %s20
      %s22 = sshll.u32 [#allocation2], 4
      %s23 = int_to_ptr.vmem [resolvable:$true] %s22
      %28 = dma.hbm_to_vmem [thread:$0]  %s2, 1024, %s23, [#allocation3], 64, 64, 4
    $region13: #{encode_texts.1} parent=1 // pred_fallthru
      _
    // Predicated region
    $region14: #{encode_texts.1} parent=1 // pred_check
      _
    $region15: #{encode_texts.1} parent=1 // pred_check_branch
      %30 = sbr.rel (0) target = $region17
    $region16: #{encode_texts.1} parent=1 // pred_region
      %s32 = ssub.s32 1024, 1024
      %33 = vsyncadd [#allocation6], %s32
      %s34 = sshll.u32 [#allocation5], 4
      %s35 = int_to_ptr.vmem [resolvable:$true] %s34
      %40 = dma.hbm_to_vmem [thread:$0]  %s3, 1024, %s35, [#allocation6], 64, 64, 4
    $region17: #{encode_texts.1} parent=1 // pred_fallthru
      _
    // Predicated region
    $region18: #{encode_texts.1} parent=1 // pred_check
      _
    $region19: #{encode_texts.1} parent=1 // pred_check_branch
      %42 = sbr.rel (0) target = $region21
    $region20: #{encode_texts.1} parent=1 // pred_region
      _
    $region21: #{encode_texts.1} parent=1 // pred_fallthru
      _
    // Predicated region
    $region22: #{encode_texts.1} parent=1 // pred_check
      _
    $region23: #{encode_texts.1} parent=1 // pred_check_branch
      %44 = sbr.rel (0) target = $region25
    $region24: #{encode_texts.1} parent=1 // pred_region
      %45 = dma.done [#allocation3], 1024
    $region25: #{encode_texts.1} parent=1 // pred_fallthru
      _
    // Predicated region
    $region26: #{encode_texts.1} parent=1 // pred_check
      _
    $region27: #{encode_texts.1} parent=1 // pred_check_branch
      %47 = sbr.rel (0) target = $region29
    $region28: #{encode_texts.1} parent=1 // pred_region
      %48 = dma.done [#allocation6], 1024
    $region29: #{encode_texts.1} parent=1 // pred_fallthru
      _
    %v50 = vld [vmem:[%s0] sm:$0xff]
    %v51 = vld [vmem:[%s1] sm:$0xff]
    %v52 = vlaneseq
    %v53 = vand.u32 %v52, 127
    %v54 = vlaneseq
    %v55 = vshrl.u32 %v54, 7
    %v56 = vsub.s32 0, %v55
    %v57 = vrot.slane %v50, %v56
    %59 = vbcast.lane.b32.xlu0 %v57, 256
    %v60 = vpop.permute.xlu0 %59
    %v61 = vlaneseq
    %v62 = vshrl.u32 %v61, 7
    %v63 = vsub.s32 1, %v62
    %v64 = vrot.slane %v50, %v63
    %66 = vbcast.lane.b32.xlu0 %v64, 256
    %v67 = vpop.permute.xlu0 %66
    %v68 = vlaneseq
    %v69 = vshrl.u32 %v68, 7
    %v70 = vsub.s32 2, %v69
    %v71 = vrot.slane %v50, %v70
    %73 = vbcast.lane.b32.xlu0 %v71, 256
    %v74 = vpop.permute.xlu0 %73
    %v75 = vlaneseq
    %v76 = vshrl.u32 %v75, 7
    %v77 = vsub.s32 3, %v76
    %v78 = vrot.slane %v50, %v77
    %80 = vbcast.lane.b32.xlu0 %v78, 256
    %v81 = vpop.permute.xlu0 %80
    %v82 = vlaneseq
    %v83 = vshrl.u32 %v82, 7
    %v84 = vsub.s32 4, %v83
    %v85 = vrot.slane %v50, %v84
    %87 = vbcast.lane.b32.xlu0 %v85, 256
    %v88 = vpop.permute.xlu0 %87
    %v89 = vlaneseq
    %v90 = vshrl.u32 %v89, 7
    %v91 = vsub.s32 5, %v90
    %v92 = vrot.slane %v50, %v91
    %94 = vbcast.lane.b32.xlu0 %v92, 256
    %v95 = vpop.permute.xlu0 %94
    %v96 = vlaneseq
    %v97 = vshrl.u32 %v96, 7
    %v98 = vsub.s32 6, %v97
    %v99 = vrot.slane %v50, %v98
    %101 = vbcast.lane.b32.xlu0 %v99, 256
    %v102 = vpop.permute.xlu0 %101
    %v103 = vlaneseq
    %v104 = vshrl.u32 %v103, 7
    %v105 = vsub.s32 7, %v104
    %v106 = vrot.slane %v50, %v105
    %108 = vbcast.lane.b32.xlu0 %v106, 256
    %v109 = vpop.permute.xlu0 %108
    %v110 = vlaneseq
    %v111 = vshrl.u32 %v110, 7
    %v112 = vsub.s32 0, %v111
    %v113 = vrot.slane %v51, %v112
    %115 = vbcast.lane.b32.xlu0 %v113, 256
    %v116 = vpop.permute.xlu0 %115
    %v117 = vlaneseq
    %v118 = vshrl.u32 %v117, 7
    %v119 = vsub.s32 1, %v118
    %v120 = vrot.slane %v51, %v119
    %122 = vbcast.lane.b32.xlu0 %v120, 256
    %v123 = vpop.permute.xlu0 %122
    %v124 = vlaneseq
    %v125 = vshrl.u32 %v124, 7
    %v126 = vsub.s32 2, %v125
    %v127 = vrot.slane %v51, %v126
    %129 = vbcast.lane.b32.xlu0 %v127, 256
    %v130 = vpop.permute.xlu0 %129
    %v131 = vlaneseq
    %v132 = vshrl.u32 %v131, 7
    %v133 = vsub.s32 3, %v132
    %v134 = vrot.slane %v51, %v133
    %136 = vbcast.lane.b32.xlu0 %v134, 256
    %v137 = vpop.permute.xlu0 %136
    %v138 = vlaneseq
    %v139 = vshrl.u32 %v138, 7
    %v140 = vsub.s32 4, %v139
    %v141 = vrot.slane %v51, %v140
    %143 = vbcast.lane.b32.xlu0 %v141, 256
    %v144 = vpop.permute.xlu0 %143
    %v145 = vlaneseq
    %v146 = vshrl.u32 %v145, 7
    %v147 = vsub.s32 5, %v146
    %v148 = vrot.slane %v51, %v147
    %150 = vbcast.lane.b32.xlu0 %v148, 256
    %v151 = vpop.permute.xlu0 %150
    %v152 = vlaneseq
    %v153 = vshrl.u32 %v152, 7
    %v154 = vsub.s32 6, %v153
    %v155 = vrot.slane %v51, %v154
    %157 = vbcast.lane.b32.xlu0 %v155, 256
    %v158 = vpop.permute.xlu0 %157
    %v159 = vlaneseq
    %v160 = vshrl.u32 %v159, 7
    %v161 = vsub.s32 7, %v160
    %v162 = vrot.slane %v51, %v161
    %164 = vbcast.lane.b32.xlu0 %v162, 256
    %v165 = vpop.permute.xlu0 %164
    %vm166 = vcmp.eq.s32.totalorder %v60, %v53
    %vm167 = vcmp.eq.s32.totalorder %v67, %v53
    %vm168 = vcmp.eq.s32.totalorder %v74, %v53
    %vm169 = vcmp.eq.s32.totalorder %v81, %v53
    %vm170 = vcmp.eq.s32.totalorder %v88, %v53
    %vm171 = vcmp.eq.s32.totalorder %v95, %v53
    %vm172 = vcmp.eq.s32.totalorder %v102, %v53
    %vm173 = vcmp.eq.s32.totalorder %v109, %v53
    %v174 = vsel %vm166, %v116, 0.0
    %v175 = vsel %vm167, %v123, 0.0
    %v176 = vsel %vm168, %v130, 0.0
    %v177 = vsel %vm169, %v137, 0.0
    %v178 = vsel %vm170, %v144, 0.0
    %v179 = vsel %vm171, %v151, 0.0
    %v180 = vsel %vm172, %v158, 0.0
    %v181 = vsel %vm173, %v165, 0.0
    %v182 = vrot.slane %v174, 4
    %v183 = vadd.f32 %v174, %v182
    %v184 = vrot.slane %v183, 2
    %v185 = vadd.f32 %v183, %v184
    %v186 = vrot.slane %v185, 1
    %v187 = vadd.f32 %v185, %v186
    %v188 = vrot.slane %v175, 4
    %v189 = vadd.f32 %v175, %v188
    %v190 = vrot.slane %v189, 2
    %v191 = vadd.f32 %v189, %v190
    %v192 = vrot.slane %v191, 1
    %v193 = vadd.f32 %v191, %v192
    %v194 = vrot.slane %v176, 4
    %v195 = vadd.f32 %v176, %v194
    %v196 = vrot.slane %v195, 2
    %v197 = vadd.f32 %v195, %v196
    %v198 = vrot.slane %v197, 1
    %v199 = vadd.f32 %v197, %v198
    %v200 = vrot.slane %v177, 4
    %v201 = vadd.f32 %v177, %v200
    %v202 = vrot.slane %v201, 2
    %v203 = vadd.f32 %v201, %v202
    %v204 = vrot.slane %v203, 1
    %v205 = vadd.f32 %v203, %v204
    %v206 = vrot.slane %v178, 4
    %v207 = vadd.f32 %v178, %v206
    %v208 = vrot.slane %v207, 2
    %v209 = vadd.f32 %v207, %v208
    %v210 = vrot.slane %v209, 1
    %v211 = vadd.f32 %v209, %v210
    %v212 = vrot.slane %v179, 4
    %v213 = vadd.f32 %v179, %v212
    %v214 = vrot.slane %v213, 2
    %v215 = vadd.f32 %v213, %v214
    %v216 = vrot.slane %v215, 1
    %v217 = vadd.f32 %v215, %v216
    %v218 = vrot.slane %v180, 4
    %v219 = vadd.f32 %v180, %v218
    %v220 = vrot.slane %v219, 2
    %v221 = vadd.f32 %v219, %v220
    %v222 = vrot.slane %v221, 1
    %v223 = vadd.f32 %v221, %v222
    %v224 = vrot.slane %v181, 4
    %v225 = vadd.f32 %v181, %v224
    %v226 = vrot.slane %v225, 2
    %v227 = vadd.f32 %v225, %v226
    %v228 = vrot.slane %v227, 1
    %v229 = vadd.f32 %v227, %v228
    %v230 = vpack.c.bf16 %v187, %v187
    %v231 = vpack.c.bf16 %v193, %v193
    %v232 = vpack.c.bf16 %v199, %v199
    %v233 = vpack.c.bf16 %v205, %v205
    %v234 = vpack.c.bf16 %v211, %v211
    %v235 = vpack.c.bf16 %v217, %v217
    %v236 = vpack.c.bf16 %v223, %v223
    %v237 = vpack.c.bf16 %v229, %v229
    %v238 = vld [vmem:[#allocation2] sm:$0xf]
    %v239 = vld [vmem:[#allocation2 + $0x4] sm:$0xf]
    %v240 = vld [vmem:[#allocation2 + $0x8] sm:$0xf]
    %v241 = vld [vmem:[#allocation2 + $0xc] sm:$0xf]
    %v242 = vld [vmem:[#allocation2 + $0x10] sm:$0xf]
    %v243 = vld [vmem:[#allocation2 + $0x14] sm:$0xf]
    %v244 = vld [vmem:[#allocation2 + $0x18] sm:$0xf]
    %v245 = vld [vmem:[#allocation2 + $0x1c] sm:$0xf]
    %v246 = vld [vmem:[#allocation2 + $0x20] sm:$0xf]
    %v247 = vld [vmem:[#allocation2 + $0x24] sm:$0xf]
    %v248 = vld [vmem:[#allocation2 + $0x28] sm:$0xf]
    %v249 = vld [vmem:[#allocation2 + $0x2c] sm:$0xf]
    %v250 = vld [vmem:[#allocation2 + $0x30] sm:$0xf]
    %v251 = vld [vmem:[#allocation2 + $0x34] sm:$0xf]
    %v252 = vld [vmem:[#allocation2 + $0x38] sm:$0xf]
    %v253 = vld [vmem:[#allocation2 + $0x3c] sm:$0xf]
    %v262 = vunpack.c.l.b16 %v230
    %v263 = vunpack.c.l.b16 %v231
    %v264 = vunpack.c.l.b16 %v232
    %v265 = vunpack.c.l.b16 %v233
    %v266 = vunpack.c.l.b16 %v234
    %v267 = vunpack.c.l.b16 %v235
    %v268 = vunpack.c.l.b16 %v236
    %v269 = vunpack.c.l.b16 %v237
    %vm270 = vcmask 1041409
    %v271 = vsel %vm270, %v263, %v262
    %vm272 = vcmask 1042434
    %v273 = vsel %vm272, %v264, %v271
    %vm274 = vcmask 1043459
    %v275 = vsel %vm274, %v265, %v273
    %vm276 = vcmask 1044484
    %v277 = vsel %vm276, %v266, %v275
    %vm278 = vcmask 1045509
    %v279 = vsel %vm278, %v267, %v277
    %vm280 = vcmask 1046534
    %v281 = vsel %vm280, %v268, %v279
    %vm282 = vcmask 1047559
    %v283 = vsel %vm282, %v269, %v281
    %v284 = vpack.c.b16 %v283, %v283
    %v302 = vunpack.c.l.b16 %v238
    %v303 = vunpack.c.l.b16 %v239
    %v304 = vunpack.c.l.b16 %v240
    %v305 = vunpack.c.l.b16 %v241
    %v306 = vunpack.c.l.b16 %v242
    %v307 = vunpack.c.l.b16 %v243
    %v308 = vunpack.c.l.b16 %v244
    %v309 = vunpack.c.l.b16 %v245
    %v310 = vunpack.c.l.b16 %v246
    %v311 = vunpack.c.l.b16 %v247
    %v312 = vunpack.c.l.b16 %v248
    %v313 = vunpack.c.l.b16 %v249
    %v314 = vunpack.c.l.b16 %v250
    %v315 = vunpack.c.l.b16 %v251
    %v316 = vunpack.c.l.b16 %v252
    %v317 = vunpack.c.l.b16 %v253
    %v318 = vpack.c.b16 %v303, %v302
    %v319 = vpack.c.b16 %v305, %v304
    %v320 = vpack.c.b16 %v307, %v306
    %v321 = vpack.c.b16 %v309, %v308
    %v322 = vpack.c.b16 %v311, %v310
    %v323 = vpack.c.b16 %v313, %v312
    %v324 = vpack.c.b16 %v315, %v314
    %v325 = vpack.c.b16 %v317, %v316
    %334 = vmatprep.subr.bf16.mxu0 0
    %335 = vmatpush1.bf16.msra.mxu0 %v318
    %336 = vmatprep.subr.bf16.mxu0 0
    %337 = vmatpush1.bf16.msra.mxu0 %v319
    %338 = vmatprep.subr.bf16.mxu0 0
    %339 = vmatpush1.bf16.msra.mxu0 %v320
    %340 = vmatprep.subr.bf16.mxu0 0
    %341 = vmatpush1.bf16.msra.mxu0 %v321
    %342 = vmatprep.subr.bf16.mxu0 0
    %343 = vmatpush1.bf16.msra.mxu0 %v322
    %344 = vmatprep.subr.bf16.mxu0 0
    %345 = vmatpush1.bf16.msra.mxu0 %v323
    %346 = vmatprep.subr.bf16.mxu0 0
    %347 = vmatpush1.bf16.msra.mxu0 %v324
    %348 = vmatprep.subr.bf16.mxu0 0
    %349 = vmatpush1.bf16.msra.mxu0 %v325
    %350 = vmatprep.subr.bf16.mxu0 0
    %351 = vmatpush1.bf16.msra.mxu0 0
    %352 = vmatprep.subr.bf16.mxu0 0
    %353 = vmatpush1.bf16.msra.mxu0 0
    %354 = vmatprep.subr.bf16.mxu0 0
    %355 = vmatpush1.bf16.msra.mxu0 0
    %356 = vmatprep.subr.bf16.mxu0 0
    %357 = vmatpush1.bf16.msra.mxu0 0
    %358 = vmatprep.subr.bf16.mxu0 0
    %359 = vmatpush1.bf16.msra.mxu0 0
    %360 = vmatprep.subr.bf16.mxu0 0
    %361 = vmatpush1.bf16.msra.mxu0 0
    %362 = vmatprep.subr.bf16.mxu0 0
    %363 = vmatpush1.bf16.msra.mxu0 0
    %364 = vmatprep.subr.bf16.mxu0 0
    %365 = vmatpush1.bf16.msra.mxu0 0
    %366 = vmatprep.mubr.bf16.mxu0 0
    %367 = vmatmul.mubr.bf16.gmra.mrb[0].mxu0 %v284
    %v368 = vpop.f32.mrb[0].mxu0
    %v369 = vadd.f32 0.0, %v368
    %v370 = vpop.f32.mrb[0].mxu0
    %v371 = vpop.f32.mrb[0].mxu0
    %v372 = vpop.f32.mrb[0].mxu0
    %373 = vdwg.mxu0
    %v374 = vpack.c.bf16 %v369, %v369
    %v375 = vld [vmem:[#allocation5] sm:$0xf]
    %v376 = vld [vmem:[#allocation5 + $0x4] sm:$0xf]
    %v377 = vld [vmem:[#allocation5 + $0x8] sm:$0xf]
    %v378 = vld [vmem:[#allocation5 + $0xc] sm:$0xf]
    %v379 = vld [vmem:[#allocation5 + $0x10] sm:$0xf]
    %v380 = vld [vmem:[#allocation5 + $0x14] sm:$0xf]
    %v381 = vld [vmem:[#allocation5 + $0x18] sm:$0xf]
    %v382 = vld [vmem:[#allocation5 + $0x1c] sm:$0xf]
    %v383 = vld [vmem:[#allocation5 + $0x20] sm:$0xf]
    %v384 = vld [vmem:[#allocation5 + $0x24] sm:$0xf]
    %v385 = vld [vmem:[#allocation5 + $0x28] sm:$0xf]
    %v386 = vld [vmem:[#allocation5 + $0x2c] sm:$0xf]
    %v387 = vld [vmem:[#allocation5 + $0x30] sm:$0xf]
    %v388 = vld [vmem:[#allocation5 + $0x34] sm:$0xf]
    %v389 = vld [vmem:[#allocation5 + $0x38] sm:$0xf]
    %v390 = vld [vmem:[#allocation5 + $0x3c] sm:$0xf]
    %v391 = vld [vmem:[%s4] sm:$0x1]
    %v393 = vlaneseq
    %v394 = vshrl.u32 %v393, 7
    %v395 = vsub.s32 0, %v394
    %v396 = vrot.slane %v391, %v395
    %v414 = vunpack.c.l.b16 %v375
    %v415 = vunpack.c.l.b16 %v376
    %v416 = vunpack.c.l.b16 %v377
    %v417 = vunpack.c.l.b16 %v378
    %v418 = vunpack.c.l.b16 %v379
    %v419 = vunpack.c.l.b16 %v380
    %v420 = vunpack.c.l.b16 %v381
    %v421 = vunpack.c.l.b16 %v382
    %v422 = vunpack.c.l.b16 %v383
    %v423 = vunpack.c.l.b16 %v384
    %v424 = vunpack.c.l.b16 %v385
    %v425 = vunpack.c.l.b16 %v386
    %v426 = vunpack.c.l.b16 %v387
    %v427 = vunpack.c.l.b16 %v388
    %v428 = vunpack.c.l.b16 %v389
    %v429 = vunpack.c.l.b16 %v390
    %v430 = vpack.c.b16 %v415, %v414
    %v431 = vpack.c.b16 %v417, %v416
    %v432 = vpack.c.b16 %v419, %v418
    %v433 = vpack.c.b16 %v421, %v420
    %v434 = vpack.c.b16 %v423, %v422
    %v435 = vpack.c.b16 %v425, %v424
    %v436 = vpack.c.b16 %v427, %v426
    %v437 = vpack.c.b16 %v429, %v428
    %446 = vmatprep.subr.bf16.mxu0 0
    %447 = vmatpush1.bf16.msra.mxu0 %v430
    %448 = vmatprep.subr.bf16.mxu0 0
    %449 = vmatpush1.bf16.msra.mxu0 %v431
    %450 = vmatprep.subr.bf16.mxu0 0
    %451 = vmatpush1.bf16.msra.mxu0 %v432
    %452 = vmatprep.subr.bf16.mxu0 0
    %453 = vmatpush1.bf16.msra.mxu0 %v433
    %454 = vmatprep.subr.bf16.mxu0 0
    %455 = vmatpush1.bf16.msra.mxu0 %v434
    %456 = vmatprep.subr.bf16.mxu0 0
    %457 = vmatpush1.bf16.msra.mxu0 %v435
    %458 = vmatprep.subr.bf16.mxu0 0
    %459 = vmatpush1.bf16.msra.mxu0 %v436
    %460 = vmatprep.subr.bf16.mxu0 0
    %461 = vmatpush1.bf16.msra.mxu0 %v437
    %462 = vmatprep.subr.bf16.mxu0 0
    %463 = vmatpush1.bf16.msra.mxu0 0
    %464 = vmatprep.subr.bf16.mxu0 0
    %465 = vmatpush1.bf16.msra.mxu0 0
    %466 = vmatprep.subr.bf16.mxu0 0
    %467 = vmatpush1.bf16.msra.mxu0 0
    %468 = vmatprep.subr.bf16.mxu0 0
    %469 = vmatpush1.bf16.msra.mxu0 0
    %470 = vmatprep.subr.bf16.mxu0 0
    %471 = vmatpush1.bf16.msra.mxu0 0
    %472 = vmatprep.subr.bf16.mxu0 0
    %473 = vmatpush1.bf16.msra.mxu0 0
    %474 = vmatprep.subr.bf16.mxu0 0
    %475 = vmatpush1.bf16.msra.mxu0 0
    %476 = vmatprep.subr.bf16.mxu0 0
    %477 = vmatpush1.bf16.msra.mxu0 0
    %478 = vmatprep.mubr.bf16.mxu0 0
    %479 = vmatmul.mubr.bf16.gmra.mrb[0].mxu0 %v374
    %v480 = vpop.f32.mrb[0].mxu0
    %v481 = vadd.f32 %v396, %v480
    %v482 = vpop.f32.mrb[0].mxu0
    %v483 = vpop.f32.mrb[0].mxu0
    %v484 = vpop.f32.mrb[0].mxu0
    %485 = vdwg.mxu0
    %486 = vst [vmem:[#allocation7] sm:$0xff] %v481
    // Predicated region
    $region30: #{encode_texts.1} parent=1 // pred_check
      _
    $region31: #{encode_texts.1} parent=1 // pred_check_branch
      %488 = sbr.rel (0) target = $region33
    $region32: #{encode_texts.1} parent=1 // pred_region
      %s490 = ssub.s32 128, 128
      %491 = vsyncadd [#allocation4], %s490
      %s493 = sshll.u32 [#allocation7], 4
      %s494 = int_to_ptr.vmem [resolvable:$true] %s493
      %496 = dma.vmem_to_hbm [thread:$0]  %s494, 128, %s5, [#allocation4]
    $region33: #{encode_texts.1} parent=1 // pred_fallthru
      _
    // Predicated region
    $region34: #{encode_texts.1} parent=1 // pred_check
      _
    $region35: #{encode_texts.1} parent=1 // pred_check_branch
      %498 = sbr.rel (0) target = $region37
    $region36: #{encode_texts.1} parent=1 // pred_region
      %499 = dma.done [#allocation4], 128
    $region37: #{encode_texts.1} parent=1 // pred_fallthru
      _
    %500 = vsyncpa [#allocation3], 1
    %501 = vsyncpa [#allocation6], 1
    %502 = vsyncpa [#allocation4], 1

</llo_original>
